<compile_context>
chip_gen: v7x
topology: tpu7x:2x2x1
jax: 0.10.0
libtpu: 0.0.40
codegen_flags: <defaults>
</compile_context>

<pallas_src>
import functools
import math

import jax
import jax.numpy as jnp
from jax import lax
from jax.experimental import pallas as pl
from jax.experimental.pallas import tpu as pltpu

# --- constants taken from the reference module ----------------------------------
BLOCK_SIZE = 4
TEXT = "hello world this is a mini GPT hello world this is fun GPT"
VOCAB = sorted(list(set(TEXT.split())))
VOCAB_SIZE = len(VOCAB)          # 8
EMBED_SIZE = 32
HIDDEN = 4 * EMBED_SIZE          # 128
N_BLOCKS = 2
LN_EPS = 1e-5
LANES = 128
V_PAD = ((VOCAB_SIZE + LANES - 1) // LANES) * LANES     # lane-dense logits store (128)
MASK_VAL = -1e4                  # exp(-1e4) underflows to exactly 0 in f32 (no max-subtract)

# bf16 weight-slab row offsets (independent of B, T); each group is (E, 128) per block
WQKV_OFF = 0                     # 2 blocks x (E, 3E) lane-padded to 128
W1_OFF = 2 * EMBED_SIZE          # 2 blocks x (E, HIDDEN)
W2T_OFF = 4 * EMBED_SIZE         # 2 blocks x (E, HIDDEN)  == w2.T
HEAD_OFF = 6 * EMBED_SIZE        # (E, 128)                == lane-padded head
W_ROWS = 7 * EMBED_SIZE          # 224 rows


def _r8(n):
    return ((n + 7) // 8) * 8


def slab_offsets(BT):
    """Row offsets into the packed f32 slab (all group starts 8-row aligned)."""
    tok = 0
    pos = tok + _r8(VOCAB_SIZE)
    bqkv = pos + _r8(BT)
    b1 = bqkv + _r8(N_BLOCKS)
    b2 = b1 + _r8(N_BLOCKS)
    headb = b2 + _r8(N_BLOCKS)
    rows = headb + _r8(1)
    return {"tok": tok, "pos": pos, "bqkv": bqkv, "b1": b1, "b2": b2,
            "headb": headb, "rows": rows}


# --- Pallas kernel ----------------------------------------------------------------
def tinygpt_kernel(idx_ref, fslab_ref, wslab_ref, out_ref, *, seq_len, off):
    BT = idx_ref.shape[0]                     # B*T flattened rows
    E, H, V = EMBED_SIZE, HIDDEN, VOCAB_SIZE

    # ---- block-diagonal causal additive bias generated in-kernel (iota/compare on VPU) ----
    r = lax.broadcasted_iota(jnp.int32, (BT, BT), 0)
    c = lax.broadcasted_iota(jnp.int32, (BT, BT), 1)
    if seq_len & (seq_len - 1) == 0:          # power-of-two T -> shift (T=4 here)
        shift = seq_len.bit_length() - 1
        same_seq = (r >> shift) == (c >> shift)
    else:                                      # fallback (never hit for block_size=4)
        same_seq = (r // seq_len) == (c // seq_len)
    bias = jnp.where((r >= c) & same_seq, 0.0, MASK_VAL).astype(jnp.float32)

    # ---- fused token-embedding gather (one-hot @ table on the MXU, exact in f32) + pos ----
    tok_tab = fslab_ref[off["tok"]:off["tok"] + V, :E]                      # (V, E)
    onehot = (idx_ref[...] ==
              lax.broadcasted_iota(jnp.int32, (BT, V), 1)).astype(jnp.float32)
    x = jnp.dot(onehot, tok_tab, preferred_element_type=jnp.float32)        # (BT, E)
    x = x + fslab_ref[off["pos"]:off["pos"] + BT, :E]

    # LN gamma/beta are folded into the downstream weights at prepare time; in-kernel LN is
    # pure normalization.  E[x] and E[x^2] are two independent lane reductions.
    inv_e = 1.0 / E

    def norm(h):
        mu = jnp.sum(h, axis=-1, keepdims=True) * inv_e
        ex2 = jnp.sum(h * h, axis=-1, keepdims=True) * inv_e
        return (h - mu) * lax.rsqrt(ex2 - mu * mu + LN_EPS)

    # per-block bias rows, loaded once from 8-row-aligned group starts
    bqkv_all = fslab_ref[off["bqkv"]:off["bqkv"] + N_BLOCKS, :3 * E]        # (2, 3E)
    b1_all = fslab_ref[off["b1"]:off["b1"] + N_BLOCKS, :]                   # (2, H)
    b2_all = fslab_ref[off["b2"]:off["b2"] + N_BLOCKS, :E]                  # (2, E)

    scale = 1.0 / math.sqrt(E)                # reference scales by sqrt(C) = sqrt(embed)
    for i in range(N_BLOCKS):                 # static Python unroll over the 2 GPT blocks
        # ---- x = x + SelfAttention(ln1(x)) ----
        hn = norm(x).astype(jnp.bfloat16)
        wqkv = wslab_ref[WQKV_OFF + i * E:WQKV_OFF + (i + 1) * E, :3 * E]   # (E, 3E) bf16
        qkv = jnp.dot(hn, wqkv, preferred_element_type=jnp.float32)
        qkv = qkv + bqkv_all[i:i + 1, :]                                    # folded ln1 beta
        q = qkv[:, :E].astype(jnp.bfloat16)
        k = qkv[:, E:2 * E].astype(jnp.bfloat16)
        v = qkv[:, 2 * E:3 * E].astype(jnp.bfloat16)
        wei = lax.dot_general(q, k, (((1,), (1,)), ((), ())),               # q @ k.T
                              preferred_element_type=jnp.float32) * scale + bias
        # no row-max subtraction: scores are O(0.1), masked entries underflow exp() to 0
        p = jnp.exp(wei)
        p = p * pl.reciprocal(jnp.sum(p, axis=-1, keepdims=True), approx=True)
        # dropout(p=0.1) on attention probs -> identity (eval mode)
        x = x + jnp.dot(p.astype(jnp.bfloat16), v, preferred_element_type=jnp.float32)

        # ---- x = x + FFN(ln2(x)) ----
        hn = norm(x).astype(jnp.bfloat16)
        w1 = wslab_ref[W1_OFF + i * E:W1_OFF + (i + 1) * E, :]              # (E, H) bf16
        h1 = jnp.dot(hn, w1, preferred_element_type=jnp.float32) + b1_all[i:i + 1, :]
        h1 = jnp.maximum(h1, 0.0).astype(jnp.bfloat16)
        w2t = wslab_ref[W2T_OFF + i * E:W2T_OFF + (i + 1) * E, :]           # (E, H) = w2.T
        ff = lax.dot_general(h1, w2t, (((1,), (1,)), ((), ())),
                             preferred_element_type=jnp.float32)
        x = x + ff + b2_all[i:i + 1, :]

    # ---- final LN + lane-padded head (single unmasked (BT, 128) store) ----
    hn = norm(x).astype(jnp.bfloat16)
    head_w = wslab_ref[HEAD_OFF:HEAD_OFF + E, :]                            # (E, 128) bf16
    logits = jnp.dot(hn, head_w, preferred_element_type=jnp.float32)
    logits = logits + fslab_ref[off["headb"]:off["headb"] + 1, :]
    out_ref[...] = logits.astype(out_ref.dtype)


# --- one-time parameter preprocessing -------------------------------------------------
def prepare_params(params, B, T):
    """Fold LN affines into downstream weights, fuse QKV, transpose w2, lane-pad the head,
    and pack everything into one f32 bias/table slab and one bf16 weight slab.  Runs once;
    nothing here sits on the per-call path."""
    E, H, V = EMBED_SIZE, HIDDEN, VOCAB_SIZE
    off = slab_offsets(B * T)

    def pad_lanes(a):
        return jnp.pad(a, ((0, 0), (0, LANES - a.shape[-1])))

    def group(rows, nrows):
        a = pad_lanes(jnp.concatenate(rows, axis=0).astype(jnp.float32))
        return jnp.pad(a, ((0, nrows - a.shape[0]), (0, 0)))

    wqkv_l, bqkv_l, w1_l, b1_l, w2t_l, b2_l = [], [], [], [], [], []
    for i in range(N_BLOCKS):
        wqkv = jnp.concatenate([params["wq"][i], params["wk"][i], params["wv"][i]], axis=-1)
        g1, b1ln = params["ln1_g"][i].reshape(E, 1), params["ln1_b"][i].reshape(1, E)
        wqkv_l.append(pad_lanes(g1 * wqkv))              # ln1 gamma folded into Wqkv
        bqkv_l.append(b1ln @ wqkv)                       # ln1 beta  folded into a bias row

        g2, b2ln = params["ln2_g"][i].reshape(E, 1), params["ln2_b"][i].reshape(1, E)
        w1_l.append(g2 * params["w1"][i])                # ln2 gamma folded into W1
        b1_l.append(params["b1"][i].reshape(1, H) + b2ln @ params["w1"][i])
        w2t_l.append(params["w2"][i].T)                  # stored transposed: (E, H)
        b2_l.append(params["b2"][i].reshape(1, E))

    gf, bfln = params["lnf_g"].reshape(E, 1), params["lnf_b"].reshape(1, E)
    head_w = pad_lanes(gf * params["head_w"])            # lane-padded to 128 outputs
    head_b = pad_lanes(params["head_b"].reshape(1, V) + bfln @ params["head_w"])

    # bf16 weight slab: [wqkv(2) | w1(2) | w2^T(2) | head] -> (224, 128)
    wslab = jnp.concatenate(wqkv_l + w1_l + w2t_l + [head_w], axis=0).astype(jnp.bfloat16)

    # f32 slab: token table, pre-tiled pos embedding, all bias rows -> (48, 128)
    pos_tiled = jnp.tile(params["pos_embed"][:T], (B, 1))
    fslab = jnp.concatenate([
        group([params["tok_embed"]], off["pos"] - off["tok"]),
        group([pos_tiled], off["bqkv"] - off["pos"]),
        group(bqkv_l, off["b1"] - off["bqkv"]),
        group(b1_l, off["b2"] - off["b1"]),
        group(b2_l, off["headb"] - off["b2"]),
        group([head_b], off["rows"] - off["headb"]),
    ], axis=0)

    return {"fslab": jax.device_put(fslab), "wslab": jax.device_put(wslab)}


# --- jitted forward (kernel call only; no per-call parameter glue) ---------------------
@jax.jit
def tinygpt_forward(idx, fslab, wslab):
    B, T = idx.shape
    BT = B * T
    off = slab_offsets(BT)
    idx2d = idx.reshape(BT, 1).astype(jnp.int32)

    kernel = functools.partial(tinygpt_kernel, seq_len=T, off=off)

    grid_spec = pltpu.PrefetchScalarGridSpec(
        num_scalar_prefetch=0,
        grid=(1,),                                        # whole problem in one step
        in_specs=[pl.BlockSpec((BT, 1), lambda g: (0, 0)),
                  pl.BlockSpec(fslab.shape, lambda g: (0, 0)),
                  pl.BlockSpec(wslab.shape, lambda g: (0, 0))],
        out_specs=pl.BlockSpec((BT, V_PAD), lambda g: (0, 0)),
    )

    logits_padded = pl.pallas_call(
        kernel,
        out_shape=jax.ShapeDtypeStruct((BT, V_PAD), jnp.float32),
        grid_spec=grid_spec,
        compiler_params=pltpu.CompilerParams(dimension_semantics=("arbitrary",)),
    )(idx2d, fslab, wslab)

    return logits_padded[:, :VOCAB_SIZE].reshape(B, T, VOCAB_SIZE)


# --- pure-JAX reference (for a sanity check) -----------------------------------------
def tinygpt_reference(idx, params):
    B, T = idx.shape
    x = params["tok_embed"][idx] + params["pos_embed"][:T][None]

    def ln(h, g, b):
        mu = jnp.mean(h, axis=-1, keepdims=True)
        var = jnp.mean((h - mu) ** 2, axis=-1, keepdims=True)
        return (h - mu) / jnp.sqrt(var + LN_EPS) * g + b

    mask = jnp.tril(jnp.ones((T, T), bool))
    for i in range(N_BLOCKS):
        h = ln(x, params["ln1_g"][i], params["ln1_b"][i])
        k = h @ params["wk"][i]
        q = h @ params["wq"][i]
        v = h @ params["wv"][i]
        wei = (q @ jnp.swapaxes(k, -1, -2)) / math.sqrt(EMBED_SIZE)
        wei = jnp.where(mask, wei, -jnp.inf)
        wei = jax.nn.softmax(wei, axis=-1)
        x = x + wei @ v
        h = ln(x, params["ln2_g"][i], params["ln2_b"][i])
        h = jnp.maximum(h @ params["w1"][i] + params["b1"][i], 0.0)
        x = x + h @ params["w2"][i] + params["b2"][i]
    x = ln(x, params["lnf_g"], params["lnf_b"])
    return x @ params["head_w"] + params["head_b"]


# --- deterministic parameter construction --------------------------------------------
def init_params(key):
    def nrm(k, shape, scale=0.02):
        return (scale * jax.random.normal(k, shape)).astype(jnp.float32)

    ks = iter(jax.random.split(key, 16))
    return {
        "tok_embed": nrm(next(ks), (VOCAB_SIZE, EMBED_SIZE), 1.0),
        "pos_embed": nrm(next(ks), (BLOCK_SIZE, EMBED_SIZE), 1.0),
        "ln1_g": jnp.ones((N_BLOCKS, 1, EMBED_SIZE), jnp.float32),
        "ln1_b": jnp.zeros((N_BLOCKS, 1, EMBED_SIZE), jnp.float32),
        "wk": nrm(next(ks), (N_BLOCKS, EMBED_SIZE, EMBED_SIZE)),
        "wq": nrm(next(ks), (N_BLOCKS, EMBED_SIZE, EMBED_SIZE)),
        "wv": nrm(next(ks), (N_BLOCKS, EMBED_SIZE, EMBED_SIZE)),
        "ln2_g": jnp.ones((N_BLOCKS, 1, EMBED_SIZE), jnp.float32),
        "ln2_b": jnp.zeros((N_BLOCKS, 1, EMBED_SIZE), jnp.float32),
        "w1": nrm(next(ks), (N_BLOCKS, EMBED_SIZE, HIDDEN)),
        "b1": nrm(next(ks), (N_BLOCKS, 1, HIDDEN)),
        "w2": nrm(next(ks), (N_BLOCKS, HIDDEN, EMBED_SIZE)),
        "b2": nrm(next(ks), (N_BLOCKS, 1, EMBED_SIZE)),
        "lnf_g": jnp.ones((1, EMBED_SIZE), jnp.float32),
        "lnf_b": jnp.zeros((1, EMBED_SIZE), jnp.float32),
        "head_w": nrm(next(ks), (EMBED_SIZE, VOCAB_SIZE)),
        "head_b": nrm(next(ks), (1, VOCAB_SIZE)),
    }


if __name__ == "__main__":
    key = jax.random.PRNGKey(0)
    k_idx, k_params = jax.random.split(key)

    B, T = 2, BLOCK_SIZE
    idx = jax.random.randint(k_idx, (B, T), 0, VOCAB_SIZE, dtype=jnp.int32)
    params = init_params(k_params)

    prepared = prepare_params(params, B, T)   # one-time: fold, fuse, pad, pack, bf16 cast

    logits = jax.block_until_ready(
        tinygpt_forward(idx, prepared["fslab"], prepared["wslab"]))
    assert logits.shape == (B, T, VOCAB_SIZE)

    ref = jax.block_until_ready(tinygpt_reference(idx, params))
    if not jnp.allclose(logits, ref, atol=2e-2, rtol=2e-2):
        raise AssertionError("Pallas kernel output does not match reference")

    print("KERNEL_OK")
</pallas_src>

<mosaic_0001>
module attributes {stable_mosaic.version = 11 : i64} {
  func.func @tinygpt_kernel(%arg0: i32, %arg1: memref<8x1xi32, #tpu.memory_space<vmem>>, %arg2: memref<48x128xf32, #tpu.memory_space<vmem>>, %arg3: memref<224x128xbf16, #tpu.memory_space<vmem>>, %arg4: memref<8x128xf32, #tpu.memory_space<vmem>>) attributes {dimension_semantics = [#tpu.dimension_semantics<arbitrary>], iteration_bounds = array<i64: 1>, scalar_prefetch = 0 : i64, scratch_operands = 0 : i64, tpu.core_type = #tpu.core_type<tc>, window_params = [{pipeline_mode = #tpu.pipeline_mode<synchronous>, transform_indices = @transform_0, window_bounds = array<i64: 8, 1>}, {pipeline_mode = #tpu.pipeline_mode<synchronous>, transform_indices = @transform_1, window_bounds = array<i64: 48, 128>}, {pipeline_mode = #tpu.pipeline_mode<synchronous>, transform_indices = @transform_2, window_bounds = array<i64: 224, 128>}, {pipeline_mode = #tpu.pipeline_mode<synchronous>, transform_indices = @transform_3, window_bounds = array<i64: 8, 128>}]} {
    %0 = tpu.iota {dimensions = array<i32: 0>} : vector<8x8xi32>
    %1 = tpu.iota {dimensions = array<i32: 1>} : vector<8x8xi32>
    %c2_i32 = arith.constant 2 : i32
    %2 = vector.broadcast %c2_i32 : i32 to vector<8x8xi32>
    %3 = arith.shrsi %0, %2 : vector<8x8xi32>
    %c2_i32_0 = arith.constant 2 : i32
    %4 = vector.broadcast %c2_i32_0 : i32 to vector<8x8xi32>
    %5 = arith.shrsi %1, %4 : vector<8x8xi32>
    %6 = arith.cmpi eq, %3, %5 : vector<8x8xi32>
    %7 = arith.cmpi sge, %0, %1 : vector<8x8xi32>
    %8 = arith.andi %7, %6 : vector<8x8xi1>
    %cst = arith.constant 0.000000e+00 : f32
    %cst_1 = arith.constant -1.000000e+04 : f32
    %9 = vector.broadcast %cst : f32 to vector<8x8xf32>
    %10 = vector.broadcast %cst_1 : f32 to vector<8x8xf32>
    %11 = arith.select %8, %9, %10 : vector<8x8xi1>, vector<8x8xf32>
    %c0 = arith.constant 0 : index
    %c0_2 = arith.constant 0 : index
    %12 = vector.load %arg2[%c0, %c0_2] : memref<48x128xf32, #tpu.memory_space<vmem>>, vector<8x32xf32>
    %c0_3 = arith.constant 0 : index
    %c0_4 = arith.constant 0 : index
    %13 = vector.load %arg1[%c0_3, %c0_4] : memref<8x1xi32, #tpu.memory_space<vmem>>, vector<8x1xi32>
    %14 = tpu.iota {dimensions = array<i32: 1>} : vector<8x8xi32>
    %15 = vector.broadcast %13 : vector<8x1xi32> to vector<8x8xi32>
    %16 = arith.cmpi eq, %15, %14 : vector<8x8xi32>
    %17 = arith.extui %16 : vector<8x8xi1> to vector<8x8xi32>
    %18 = arith.sitofp %17 : vector<8x8xi32> to vector<8x8xf32>
    %cst_5 = arith.constant dense<0.000000e+00> : vector<8x32xf32>
    %19 = tpu.matmul %18, %12, %cst_5 {dimension_numbers = #tpu.dot_dimension_numbers<[1], [0], [0], [1], [0, 0, 1, 1], [], []>} : vector<8x8xf32>, vector<8x32xf32>, vector<8x32xf32> -> vector<8x32xf32>
    %c8 = arith.constant 8 : index
    %c0_6 = arith.constant 0 : index
    %20 = vector.load %arg2[%c8, %c0_6] : memref<48x128xf32, #tpu.memory_space<vmem>>, vector<8x32xf32>
    %21 = arith.addf %19, %20 : vector<8x32xf32>
    %c16 = arith.constant 16 : index
    %c0_7 = arith.constant 0 : index
    %22 = vector.load %arg2[%c16, %c0_7] : memref<48x128xf32, #tpu.memory_space<vmem>>, vector<2x96xf32>
    %c24 = arith.constant 24 : index
    %c0_8 = arith.constant 0 : index
    %23 = vector.load %arg2[%c24, %c0_8] : memref<48x128xf32, #tpu.memory_space<vmem>>, vector<2x128xf32>
    %c32 = arith.constant 32 : index
    %c0_9 = arith.constant 0 : index
    %24 = vector.load %arg2[%c32, %c0_9] : memref<48x128xf32, #tpu.memory_space<vmem>>, vector<2x32xf32>
    %cst_10 = arith.constant dense<0.000000e+00> : vector<8xf32>
    %25 = vector.multi_reduction <add>, %21, %cst_10 [1] : vector<8x32xf32> to vector<8xf32>
    %26 = vector.shape_cast %25 : vector<8xf32> to vector<8x1xf32>
    %cst_11 = arith.constant 3.125000e-02 : f32
    %27 = vector.broadcast %cst_11 : f32 to vector<8x1xf32>
    %28 = arith.mulf %26, %27 : vector<8x1xf32>
    %29 = arith.mulf %21, %21 : vector<8x32xf32>
    %cst_12 = arith.constant dense<0.000000e+00> : vector<8xf32>
    %30 = vector.multi_reduction <add>, %29, %cst_12 [1] : vector<8x32xf32> to vector<8xf32>
    %31 = vector.shape_cast %30 : vector<8xf32> to vector<8x1xf32>
    %cst_13 = arith.constant 3.125000e-02 : f32
    %32 = vector.broadcast %cst_13 : f32 to vector<8x1xf32>
    %33 = arith.mulf %31, %32 : vector<8x1xf32>
    %34 = vector.broadcast %28 : vector<8x1xf32> to vector<8x32xf32>
    %35 = arith.subf %21, %34 : vector<8x32xf32>
    %36 = arith.mulf %28, %28 : vector<8x1xf32>
    %37 = arith.subf %33, %36 : vector<8x1xf32>
    %cst_14 = arith.constant 9.99999974E-6 : f32
    %38 = vector.broadcast %cst_14 : f32 to vector<8x1xf32>
    %39 = arith.addf %37, %38 : vector<8x1xf32>
    %40 = math.rsqrt %39 : vector<8x1xf32>
    %41 = vector.broadcast %40 : vector<8x1xf32> to vector<8x32xf32>
    %42 = arith.mulf %35, %41 : vector<8x32xf32>
    %43 = arith.truncf %42 : vector<8x32xf32> to vector<8x32xbf16>
    %c0_15 = arith.constant 0 : index
    %c0_16 = arith.constant 0 : index
    %44 = vector.load %arg3[%c0_15, %c0_16] : memref<224x128xbf16, #tpu.memory_space<vmem>>, vector<32x96xbf16>
    %cst_17 = arith.constant dense<0.000000e+00> : vector<8x96xf32>
    %45 = tpu.matmul %43, %44, %cst_17 {dimension_numbers = #tpu.dot_dimension_numbers<[1], [0], [0], [1], [0, 0, 1, 1], [], []>} : vector<8x32xbf16>, vector<32x96xbf16>, vector<8x96xf32> -> vector<8x96xf32>
    %46 = vector.extract_strided_slice %22 {offsets = [0, 0], sizes = [1, 96], strides = [1, 1]} : vector<2x96xf32> to vector<1x96xf32>
    %47 = vector.broadcast %46 : vector<1x96xf32> to vector<8x96xf32>
    %48 = arith.addf %45, %47 : vector<8x96xf32>
    %49 = vector.extract_strided_slice %48 {offsets = [0, 0], sizes = [8, 32], strides = [1, 1]} : vector<8x96xf32> to vector<8x32xf32>
    %50 = arith.truncf %49 : vector<8x32xf32> to vector<8x32xbf16>
    %51 = vector.extract_strided_slice %48 {offsets = [0, 32], sizes = [8, 32], strides = [1, 1]} : vector<8x96xf32> to vector<8x32xf32>
    %52 = arith.truncf %51 : vector<8x32xf32> to vector<8x32xbf16>
    %53 = vector.extract_strided_slice %48 {offsets = [0, 64], sizes = [8, 32], strides = [1, 1]} : vector<8x96xf32> to vector<8x32xf32>
    %54 = arith.truncf %53 : vector<8x32xf32> to vector<8x32xbf16>
    %cst_18 = arith.constant dense<0.000000e+00> : vector<8x8xf32>
    %55 = tpu.matmul %50, %52, %cst_18 {dimension_numbers = #tpu.dot_dimension_numbers<[1], [1], [0], [0], [0, 0, 1, 0], [], []>} : vector<8x32xbf16>, vector<8x32xbf16>, vector<8x8xf32> -> vector<8x8xf32>
    %cst_19 = arith.constant 0.176776692 : f32
    %56 = vector.broadcast %cst_19 : f32 to vector<8x8xf32>
    %57 = arith.mulf %55, %56 : vector<8x8xf32>
    %58 = arith.addf %57, %11 : vector<8x8xf32>
    %59 = math.exp %58 : vector<8x8xf32>
    %cst_20 = arith.constant dense<0.000000e+00> : vector<8xf32>
    %60 = vector.multi_reduction <add>, %59, %cst_20 [1] : vector<8x8xf32> to vector<8xf32>
    %61 = vector.shape_cast %60 : vector<8xf32> to vector<8x1xf32>
    %62 = tpu.reciprocal %61 {approx = true} : vector<8x1xf32> -> vector<8x1xf32>
    %63 = vector.broadcast %62 : vector<8x1xf32> to vector<8x8xf32>
    %64 = arith.mulf %59, %63 : vector<8x8xf32>
    %65 = arith.truncf %64 : vector<8x8xf32> to vector<8x8xbf16>
    %cst_21 = arith.constant dense<0.000000e+00> : vector<8x32xf32>
    %66 = tpu.matmul %65, %54, %cst_21 {dimension_numbers = #tpu.dot_dimension_numbers<[1], [0], [0], [1], [0, 0, 1, 1], [], []>} : vector<8x8xbf16>, vector<8x32xbf16>, vector<8x32xf32> -> vector<8x32xf32>
    %67 = arith.addf %21, %66 : vector<8x32xf32>
    %cst_22 = arith.constant dense<0.000000e+00> : vector<8xf32>
    %68 = vector.multi_reduction <add>, %67, %cst_22 [1] : vector<8x32xf32> to vector<8xf32>
    %69 = vector.shape_cast %68 : vector<8xf32> to vector<8x1xf32>
    %cst_23 = arith.constant 3.125000e-02 : f32
    %70 = vector.broadcast %cst_23 : f32 to vector<8x1xf32>
    %71 = arith.mulf %69, %70 : vector<8x1xf32>
    %72 = arith.mulf %67, %67 : vector<8x32xf32>
    %cst_24 = arith.constant dense<0.000000e+00> : vector<8xf32>
    %73 = vector.multi_reduction <add>, %72, %cst_24 [1] : vector<8x32xf32> to vector<8xf32>
    %74 = vector.shape_cast %73 : vector<8xf32> to vector<8x1xf32>
    %cst_25 = arith.constant 3.125000e-02 : f32
    %75 = vector.broadcast %cst_25 : f32 to vector<8x1xf32>
    %76 = arith.mulf %74, %75 : vector<8x1xf32>
    %77 = vector.broadcast %71 : vector<8x1xf32> to vector<8x32xf32>
    %78 = arith.subf %67, %77 : vector<8x32xf32>
    %79 = arith.mulf %71, %71 : vector<8x1xf32>
    %80 = arith.subf %76, %79 : vector<8x1xf32>
    %cst_26 = arith.constant 9.99999974E-6 : f32
    %81 = vector.broadcast %cst_26 : f32 to vector<8x1xf32>
    %82 = arith.addf %80, %81 : vector<8x1xf32>
    %83 = math.rsqrt %82 : vector<8x1xf32>
    %84 = vector.broadcast %83 : vector<8x1xf32> to vector<8x32xf32>
    %85 = arith.mulf %78, %84 : vector<8x32xf32>
    %86 = arith.truncf %85 : vector<8x32xf32> to vector<8x32xbf16>
    %c64 = arith.constant 64 : index
    %c0_27 = arith.constant 0 : index
    %87 = vector.load %arg3[%c64, %c0_27] : memref<224x128xbf16, #tpu.memory_space<vmem>>, vector<32x128xbf16>
    %cst_28 = arith.constant dense<0.000000e+00> : vector<8x128xf32>
    %88 = tpu.matmul %86, %87, %cst_28 {dimension_numbers = #tpu.dot_dimension_numbers<[1], [0], [0], [1], [0, 0, 1, 1], [], []>} : vector<8x32xbf16>, vector<32x128xbf16>, vector<8x128xf32> -> vector<8x128xf32>
    %89 = vector.extract_strided_slice %23 {offsets = [0, 0], sizes = [1, 128], strides = [1, 1]} : vector<2x128xf32> to vector<1x128xf32>
    %90 = vector.broadcast %89 : vector<1x128xf32> to vector<8x128xf32>
    %91 = arith.addf %88, %90 : vector<8x128xf32>
    %cst_29 = arith.constant 0.000000e+00 : f32
    %92 = vector.broadcast %cst_29 : f32 to vector<8x128xf32>
    %93 = arith.maximumf %91, %92 : vector<8x128xf32>
    %94 = arith.truncf %93 : vector<8x128xf32> to vector<8x128xbf16>
    %c128 = arith.constant 128 : index
    %c0_30 = arith.constant 0 : index
    %95 = vector.load %arg3[%c128, %c0_30] : memref<224x128xbf16, #tpu.memory_space<vmem>>, vector<32x128xbf16>
    %cst_31 = arith.constant dense<0.000000e+00> : vector<8x32xf32>
    %96 = tpu.matmul %94, %95, %cst_31 {dimension_numbers = #tpu.dot_dimension_numbers<[1], [1], [0], [0], [0, 0, 1, 0], [], []>} : vector<8x128xbf16>, vector<32x128xbf16>, vector<8x32xf32> -> vector<8x32xf32>
    %97 = arith.addf %67, %96 : vector<8x32xf32>
    %98 = vector.extract_strided_slice %24 {offsets = [0, 0], sizes = [1, 32], strides = [1, 1]} : vector<2x32xf32> to vector<1x32xf32>
    %99 = vector.broadcast %98 : vector<1x32xf32> to vector<8x32xf32>
    %100 = arith.addf %97, %99 : vector<8x32xf32>
    %cst_32 = arith.constant dense<0.000000e+00> : vector<8xf32>
    %101 = vector.multi_reduction <add>, %100, %cst_32 [1] : vector<8x32xf32> to vector<8xf32>
    %102 = vector.shape_cast %101 : vector<8xf32> to vector<8x1xf32>
    %cst_33 = arith.constant 3.125000e-02 : f32
    %103 = vector.broadcast %cst_33 : f32 to vector<8x1xf32>
    %104 = arith.mulf %102, %103 : vector<8x1xf32>
    %105 = arith.mulf %100, %100 : vector<8x32xf32>
    %cst_34 = arith.constant dense<0.000000e+00> : vector<8xf32>
    %106 = vector.multi_reduction <add>, %105, %cst_34 [1] : vector<8x32xf32> to vector<8xf32>
    %107 = vector.shape_cast %106 : vector<8xf32> to vector<8x1xf32>
    %cst_35 = arith.constant 3.125000e-02 : f32
    %108 = vector.broadcast %cst_35 : f32 to vector<8x1xf32>
    %109 = arith.mulf %107, %108 : vector<8x1xf32>
    %110 = vector.broadcast %104 : vector<8x1xf32> to vector<8x32xf32>
    %111 = arith.subf %100, %110 : vector<8x32xf32>
    %112 = arith.mulf %104, %104 : vector<8x1xf32>
    %113 = arith.subf %109, %112 : vector<8x1xf32>
    %cst_36 = arith.constant 9.99999974E-6 : f32
    %114 = vector.broadcast %cst_36 : f32 to vector<8x1xf32>
    %115 = arith.addf %113, %114 : vector<8x1xf32>
    %116 = math.rsqrt %115 : vector<8x1xf32>
    %117 = vector.broadcast %116 : vector<8x1xf32> to vector<8x32xf32>
    %118 = arith.mulf %111, %117 : vector<8x32xf32>
    %119 = arith.truncf %118 : vector<8x32xf32> to vector<8x32xbf16>
    %c32_37 = arith.constant 32 : index
    %c0_38 = arith.constant 0 : index
    %120 = vector.load %arg3[%c32_37, %c0_38] : memref<224x128xbf16, #tpu.memory_space<vmem>>, vector<32x96xbf16>
    %cst_39 = arith.constant dense<0.000000e+00> : vector<8x96xf32>
    %121 = tpu.matmul %119, %120, %cst_39 {dimension_numbers = #tpu.dot_dimension_numbers<[1], [0], [0], [1], [0, 0, 1, 1], [], []>} : vector<8x32xbf16>, vector<32x96xbf16>, vector<8x96xf32> -> vector<8x96xf32>
    %122 = vector.extract_strided_slice %22 {offsets = [1, 0], sizes = [1, 96], strides = [1, 1]} : vector<2x96xf32> to vector<1x96xf32>
    %123 = vector.broadcast %122 : vector<1x96xf32> to vector<8x96xf32>
    %124 = arith.addf %121, %123 : vector<8x96xf32>
    %125 = vector.extract_strided_slice %124 {offsets = [0, 0], sizes = [8, 32], strides = [1, 1]} : vector<8x96xf32> to vector<8x32xf32>
    %126 = arith.truncf %125 : vector<8x32xf32> to vector<8x32xbf16>
    %127 = vector.extract_strided_slice %124 {offsets = [0, 32], sizes = [8, 32], strides = [1, 1]} : vector<8x96xf32> to vector<8x32xf32>
    %128 = arith.truncf %127 : vector<8x32xf32> to vector<8x32xbf16>
    %129 = vector.extract_strided_slice %124 {offsets = [0, 64], sizes = [8, 32], strides = [1, 1]} : vector<8x96xf32> to vector<8x32xf32>
    %130 = arith.truncf %129 : vector<8x32xf32> to vector<8x32xbf16>
    %cst_40 = arith.constant dense<0.000000e+00> : vector<8x8xf32>
    %131 = tpu.matmul %126, %128, %cst_40 {dimension_numbers = #tpu.dot_dimension_numbers<[1], [1], [0], [0], [0, 0, 1, 0], [], []>} : vector<8x32xbf16>, vector<8x32xbf16>, vector<8x8xf32> -> vector<8x8xf32>
    %cst_41 = arith.constant 0.176776692 : f32
    %132 = vector.broadcast %cst_41 : f32 to vector<8x8xf32>
    %133 = arith.mulf %131, %132 : vector<8x8xf32>
    %134 = arith.addf %133, %11 : vector<8x8xf32>
    %135 = math.exp %134 : vector<8x8xf32>
    %cst_42 = arith.constant dense<0.000000e+00> : vector<8xf32>
    %136 = vector.multi_reduction <add>, %135, %cst_42 [1] : vector<8x8xf32> to vector<8xf32>
    %137 = vector.shape_cast %136 : vector<8xf32> to vector<8x1xf32>
    %138 = tpu.reciprocal %137 {approx = true} : vector<8x1xf32> -> vector<8x1xf32>
    %139 = vector.broadcast %138 : vector<8x1xf32> to vector<8x8xf32>
    %140 = arith.mulf %135, %139 : vector<8x8xf32>
    %141 = arith.truncf %140 : vector<8x8xf32> to vector<8x8xbf16>
    %cst_43 = arith.constant dense<0.000000e+00> : vector<8x32xf32>
    %142 = tpu.matmul %141, %130, %cst_43 {dimension_numbers = #tpu.dot_dimension_numbers<[1], [0], [0], [1], [0, 0, 1, 1], [], []>} : vector<8x8xbf16>, vector<8x32xbf16>, vector<8x32xf32> -> vector<8x32xf32>
    %143 = arith.addf %100, %142 : vector<8x32xf32>
    %cst_44 = arith.constant dense<0.000000e+00> : vector<8xf32>
    %144 = vector.multi_reduction <add>, %143, %cst_44 [1] : vector<8x32xf32> to vector<8xf32>
    %145 = vector.shape_cast %144 : vector<8xf32> to vector<8x1xf32>
    %cst_45 = arith.constant 3.125000e-02 : f32
    %146 = vector.broadcast %cst_45 : f32 to vector<8x1xf32>
    %147 = arith.mulf %145, %146 : vector<8x1xf32>
    %148 = arith.mulf %143, %143 : vector<8x32xf32>
    %cst_46 = arith.constant dense<0.000000e+00> : vector<8xf32>
    %149 = vector.multi_reduction <add>, %148, %cst_46 [1] : vector<8x32xf32> to vector<8xf32>
    %150 = vector.shape_cast %149 : vector<8xf32> to vector<8x1xf32>
    %cst_47 = arith.constant 3.125000e-02 : f32
    %151 = vector.broadcast %cst_47 : f32 to vector<8x1xf32>
    %152 = arith.mulf %150, %151 : vector<8x1xf32>
    %153 = vector.broadcast %147 : vector<8x1xf32> to vector<8x32xf32>
    %154 = arith.subf %143, %153 : vector<8x32xf32>
    %155 = arith.mulf %147, %147 : vector<8x1xf32>
    %156 = arith.subf %152, %155 : vector<8x1xf32>
    %cst_48 = arith.constant 9.99999974E-6 : f32
    %157 = vector.broadcast %cst_48 : f32 to vector<8x1xf32>
    %158 = arith.addf %156, %157 : vector<8x1xf32>
    %159 = math.rsqrt %158 : vector<8x1xf32>
    %160 = vector.broadcast %159 : vector<8x1xf32> to vector<8x32xf32>
    %161 = arith.mulf %154, %160 : vector<8x32xf32>
    %162 = arith.truncf %161 : vector<8x32xf32> to vector<8x32xbf16>
    %c96 = arith.constant 96 : index
    %c0_49 = arith.constant 0 : index
    %163 = vector.load %arg3[%c96, %c0_49] : memref<224x128xbf16, #tpu.memory_space<vmem>>, vector<32x128xbf16>
    %cst_50 = arith.constant dense<0.000000e+00> : vector<8x128xf32>
    %164 = tpu.matmul %162, %163, %cst_50 {dimension_numbers = #tpu.dot_dimension_numbers<[1], [0], [0], [1], [0, 0, 1, 1], [], []>} : vector<8x32xbf16>, vector<32x128xbf16>, vector<8x128xf32> -> vector<8x128xf32>
    %165 = vector.extract_strided_slice %23 {offsets = [1, 0], sizes = [1, 128], strides = [1, 1]} : vector<2x128xf32> to vector<1x128xf32>
    %166 = vector.broadcast %165 : vector<1x128xf32> to vector<8x128xf32>
    %167 = arith.addf %164, %166 : vector<8x128xf32>
    %cst_51 = arith.constant 0.000000e+00 : f32
    %168 = vector.broadcast %cst_51 : f32 to vector<8x128xf32>
    %169 = arith.maximumf %167, %168 : vector<8x128xf32>
    %170 = arith.truncf %169 : vector<8x128xf32> to vector<8x128xbf16>
    %c160 = arith.constant 160 : index
    %c0_52 = arith.constant 0 : index
    %171 = vector.load %arg3[%c160, %c0_52] : memref<224x128xbf16, #tpu.memory_space<vmem>>, vector<32x128xbf16>
    %cst_53 = arith.constant dense<0.000000e+00> : vector<8x32xf32>
    %172 = tpu.matmul %170, %171, %cst_53 {dimension_numbers = #tpu.dot_dimension_numbers<[1], [1], [0], [0], [0, 0, 1, 0], [], []>} : vector<8x128xbf16>, vector<32x128xbf16>, vector<8x32xf32> -> vector<8x32xf32>
    %173 = arith.addf %143, %172 : vector<8x32xf32>
    %174 = vector.extract_strided_slice %24 {offsets = [1, 0], sizes = [1, 32], strides = [1, 1]} : vector<2x32xf32> to vector<1x32xf32>
    %175 = vector.broadcast %174 : vector<1x32xf32> to vector<8x32xf32>
    %176 = arith.addf %173, %175 : vector<8x32xf32>
    %cst_54 = arith.constant dense<0.000000e+00> : vector<8xf32>
    %177 = vector.multi_reduction <add>, %176, %cst_54 [1] : vector<8x32xf32> to vector<8xf32>
    %178 = vector.shape_cast %177 : vector<8xf32> to vector<8x1xf32>
    %cst_55 = arith.constant 3.125000e-02 : f32
    %179 = vector.broadcast %cst_55 : f32 to vector<8x1xf32>
    %180 = arith.mulf %178, %179 : vector<8x1xf32>
    %181 = arith.mulf %176, %176 : vector<8x32xf32>
    %cst_56 = arith.constant dense<0.000000e+00> : vector<8xf32>
    %182 = vector.multi_reduction <add>, %181, %cst_56 [1] : vector<8x32xf32> to vector<8xf32>
    %183 = vector.shape_cast %182 : vector<8xf32> to vector<8x1xf32>
    %cst_57 = arith.constant 3.125000e-02 : f32
    %184 = vector.broadcast %cst_57 : f32 to vector<8x1xf32>
    %185 = arith.mulf %183, %184 : vector<8x1xf32>
    %186 = vector.broadcast %180 : vector<8x1xf32> to vector<8x32xf32>
    %187 = arith.subf %176, %186 : vector<8x32xf32>
    %188 = arith.mulf %180, %180 : vector<8x1xf32>
    %189 = arith.subf %185, %188 : vector<8x1xf32>
    %cst_58 = arith.constant 9.99999974E-6 : f32
    %190 = vector.broadcast %cst_58 : f32 to vector<8x1xf32>
    %191 = arith.addf %189, %190 : vector<8x1xf32>
    %192 = math.rsqrt %191 : vector<8x1xf32>
    %193 = vector.broadcast %192 : vector<8x1xf32> to vector<8x32xf32>
    %194 = arith.mulf %187, %193 : vector<8x32xf32>
    %195 = arith.truncf %194 : vector<8x32xf32> to vector<8x32xbf16>
    %c192 = arith.constant 192 : index
    %c0_59 = arith.constant 0 : index
    %196 = vector.load %arg3[%c192, %c0_59] : memref<224x128xbf16, #tpu.memory_space<vmem>>, vector<32x128xbf16>
    %cst_60 = arith.constant dense<0.000000e+00> : vector<8x128xf32>
    %197 = tpu.matmul %195, %196, %cst_60 {dimension_numbers = #tpu.dot_dimension_numbers<[1], [0], [0], [1], [0, 0, 1, 1], [], []>} : vector<8x32xbf16>, vector<32x128xbf16>, vector<8x128xf32> -> vector<8x128xf32>
    %c40 = arith.constant 40 : index
    %c0_61 = arith.constant 0 : index
    %198 = vector.load %arg2[%c40, %c0_61] : memref<48x128xf32, #tpu.memory_space<vmem>>, vector<1x128xf32>
    %199 = vector.broadcast %198 : vector<1x128xf32> to vector<8x128xf32>
    %200 = arith.addf %197, %199 : vector<8x128xf32>
    %c0_62 = arith.constant 0 : index
    %c0_63 = arith.constant 0 : index
    %201 = vector.load %arg4[%c0_62, %c0_63] : memref<8x128xf32, #tpu.memory_space<vmem>>, vector<8x128xf32>
    tpu.vector_store %arg4[%c0_62, %c0_63], %200 {strides = array<i32>} : memref<8x128xf32, #tpu.memory_space<vmem>>, vector<8x128xf32>,
    return
  }
  func.func @transform_0(%arg0: i32) -> (i32, i32) {
    %c0_i32 = arith.constant 0 : i32
    %c0_i32_0 = arith.constant 0 : i32
    %c0_i32_1 = arith.constant 0 : i32
    return %c0_i32, %c0_i32_0 : i32, i32
  }
  func.func @transform_1(%arg0: i32) -> (i32, i32) {
    %c0_i32 = arith.constant 0 : i32
    %c0_i32_0 = arith.constant 0 : i32
    %c0_i32_1 = arith.constant 0 : i32
    return %c0_i32, %c0_i32_0 : i32, i32
  }
  func.func @transform_2(%arg0: i32) -> (i32, i32) {
    %c0_i32 = arith.constant 0 : i32
    %c0_i32_0 = arith.constant 0 : i32
    %c0_i32_1 = arith.constant 0 : i32
    return %c0_i32, %c0_i32_0 : i32, i32
  }
  func.func @transform_3(%arg0: i32) -> (i32, i32) {
    %c0_i32 = arith.constant 0 : i32
    %c0_i32_0 = arith.constant 0 : i32
    %c0_i32_1 = arith.constant 0 : i32
    return %c0_i32, %c0_i32_0 : i32, i32
  }
}

</mosaic_0001>

<llo_original>
// kernel: tinygpt_forward.1
$region0: #{tinygpt_forward.1}
  #allocation0 [shape = 'u32[]', space=smem, size = 0x4, offset = 0x4, fixed_abs, tag = 'smem constant byte address 0x4 - core index']
  #allocation1 [shape = 'u32[144,128]{1,0:T(1,128)}', space=vmem, size = 0x12000, scoped, tag = 'internal scratch']
  %s0 = inlined_call_operand.vmem [shape: s32[8,1], index: 0, kind: input, shape index: {}]
  %s1 = inlined_call_operand.hbm [shape: f32[48,128], index: 1, kind: input, shape index: {}]
  %s2 = inlined_call_operand.hbm [shape: bf16[224,128], index: 2, kind: input, shape index: {}]
  %s3 = inlined_call_operand.hbm [shape: f32[8,128], index: 3, kind: output, shape index: {}]
  %s4 = sld [smem:[#allocation0]]
  $region30: #{tinygpt_forward.1} parent=0
    _
  %s6 = ssub.s32 1, %s4
  %s7 = scalar_select 0, %s6, %s4
  $region1: #{tinygpt_forward.1} parent=0
    #allocation2 [shape = 'u8[24576]{0}', space=vmem, size = 0x6000, scoped, tag = 'input window, operand 1, single buffered']
    #allocation3 [shape = 's32[1]{0}', space=sflag, size = 0x4, scoped, tag = 'scoped memory for tinygpt_forward.1']
    #allocation4 [shape = 's32[1]{0}', space=sflag, size = 0x4, scoped, tag = 'scoped memory for tinygpt_forward.1']
    #allocation5 [shape = 'u8[57344]{0}', space=vmem, size = 0xe000, scoped, tag = 'input window, operand 2, single buffered']
    #allocation6 [shape = 's32[1]{0}', space=sflag, size = 0x4, scoped, tag = 'scoped memory for tinygpt_forward.1']
    #allocation7 [shape = 'u8[4096]{0}', space=vmem, size = 0x1000, scoped, tag = 'output window, operand 0, single buffered']
    %8 = vsyncpa [#allocation3], 0
    %9 = vsyncpa [#allocation6], 0
    %10 = vsyncpa [#allocation4], 0
    // Predicated region
    $region2: #{tinygpt_forward.1} parent=1 // pred_check
      _
    $region3: #{tinygpt_forward.1} parent=1 // pred_check_branch
      %12 = sbr.rel (0) target = $region5
    $region4: #{tinygpt_forward.1} parent=1 // pred_region
      _
    $region5: #{tinygpt_forward.1} parent=1 // pred_fallthru
      _
    // Predicated region
    $region6: #{tinygpt_forward.1} parent=1 // pred_check
      _
    $region7: #{tinygpt_forward.1} parent=1 // pred_check_branch
      %14 = sbr.rel (0) target = $region9
    $region8: #{tinygpt_forward.1} parent=1 // pred_region
      %s16 = ssub.s32 768, 768
      %17 = vsyncadd [#allocation3], %s16
      %s18 = sshll.u32 [#allocation2], 4
      %s19 = int_to_ptr.vmem [resolvable:$true] %s18
      %24 = dma.hbm_to_vmem [thread:$0]  %s1, 768, %s19, [#allocation3], 128, 128, 8
    $region9: #{tinygpt_forward.1} parent=1 // pred_fallthru
      _
    // Predicated region
    $region10: #{tinygpt_forward.1} parent=1 // pred_check
      _
    $region11: #{tinygpt_forward.1} parent=1 // pred_check_branch
      %26 = sbr.rel (0) target = $region13
    $region12: #{tinygpt_forward.1} parent=1 // pred_region
      %s28 = ssub.s32 1792, 1792
      %29 = vsyncadd [#allocation6], %s28
      %s30 = sshll.u32 [#allocation5], 4
      %s31 = int_to_ptr.vmem [resolvable:$true] %s30
      %36 = dma.hbm_to_vmem [thread:$0]  %s2, 1792, %s31, [#allocation6], 64, 64, 4
    $region13: #{tinygpt_forward.1} parent=1 // pred_fallthru
      _
    // Predicated region
    $region14: #{tinygpt_forward.1} parent=1 // pred_check
      _
    $region15: #{tinygpt_forward.1} parent=1 // pred_check_branch
      %38 = sbr.rel (0) target = $region17
    $region16: #{tinygpt_forward.1} parent=1 // pred_region
      %39 = dma.done [#allocation3], 768
    $region17: #{tinygpt_forward.1} parent=1 // pred_fallthru
      _
    // Predicated region
    $region18: #{tinygpt_forward.1} parent=1 // pred_check
      _
    $region19: #{tinygpt_forward.1} parent=1 // pred_check_branch
      %41 = sbr.rel (0) target = $region21
    $region20: #{tinygpt_forward.1} parent=1 // pred_region
      %42 = dma.done [#allocation6], 1792
    $region21: #{tinygpt_forward.1} parent=1 // pred_fallthru
      _
    %v44 = vlaneseq
    %v45 = vshrl.u32 %v44, 7
    %v46 = vlaneseq
    %v47 = vand.u32 %v46, 127
    %v48 = vshra.s32 %v45, 2
    %v49 = vshra.s32 %v47, 2
    %vm50 = vcmp.eq.s32.totalorder %v48, %v49
    %vm51 = vcmp.ge.s32.totalorder %v45, %v47
    %vm52 = vmand %vm51, %vm50
    %v53 = vsel %vm52, 0.0, -10000.0
    %v54 = vld [vmem:[#allocation2] sm:$0xff]
    %v55 = vld [vmem:[%s0] sm:$0xff]
    %56 = vset.pattern.permute.xlu0 0
    %57 = vperm.xlu0 %56, %v55
    %v58 = vpop.permute.xlu0 %57
    %vm59 = vcmp.eq.s32.totalorder %v58, %v47
    %v60 = vsel %vm59, 1, 0
    %v61 = vcvt.s32.f32 %v60
    %v62 = vld [vmem:[#allocation2 + $0x8] sm:$0xff]
    %vm63 = vcmask 64512
    %v65 = vsel %vm63, %v61, 0
    %67 = vmatprep.subr.mxu0 0.0
    %68 = vmatpush1.msra.mxu0 %v54
    %69 = vmatprep.subr.mxu0 0.0
    %70 = vmatpush1.msra.mxu0 0.0
    %71 = vmatprep.subr.mxu0 0.0
    %72 = vmatpush1.msra.mxu0 0.0
    %73 = vmatprep.subr.mxu0 0.0
    %74 = vmatpush1.msra.mxu0 0.0
    %75 = vmatprep.subr.mxu0 0.0
    %76 = vmatpush1.msra.mxu0 0.0
    %77 = vmatprep.subr.mxu0 0.0
    %78 = vmatpush1.msra.mxu0 0.0
    %79 = vmatprep.subr.mxu0 0.0
    %80 = vmatpush1.msra.mxu0 0.0
    %81 = vmatprep.subr.mxu0 0.0
    %82 = vmatpush1.msra.mxu0 0.0
    %83 = vmatprep.subr.mxu0 0.0
    %84 = vmatpush1.msra.mxu0 0.0
    %85 = vmatprep.subr.mxu0 0.0
    %86 = vmatpush1.msra.mxu0 0.0
    %87 = vmatprep.subr.mxu0 0.0
    %88 = vmatpush1.msra.mxu0 0.0
    %89 = vmatprep.subr.mxu0 0.0
    %90 = vmatpush1.msra.mxu0 0.0
    %91 = vmatprep.subr.mxu0 0.0
    %92 = vmatpush1.msra.mxu0 0.0
    %93 = vmatprep.subr.mxu0 0.0
    %94 = vmatpush1.msra.mxu0 0.0
    %95 = vmatprep.subr.mxu0 0.0
    %96 = vmatpush1.msra.mxu0 0.0
    %97 = vmatprep.subr.mxu0 0.0
    %98 = vmatpush1.msra.mxu0 0.0
    %99 = vmatprep.subr.mxu0 0.0
    %100 = vmatpush1.msra.mxu0 0.0
    %101 = vmatprep.subr.mxu0 0.0
    %102 = vmatpush1.msra.mxu0 0.0
    %103 = vmatprep.subr.mxu0 0.0
    %104 = vmatpush1.msra.mxu0 0.0
    %105 = vmatprep.subr.mxu0 0.0
    %106 = vmatpush1.msra.mxu0 0.0
    %107 = vmatprep.subr.mxu0 0.0
    %108 = vmatpush1.msra.mxu0 0.0
    %109 = vmatprep.subr.mxu0 0.0
    %110 = vmatpush1.msra.mxu0 0.0
    %111 = vmatprep.subr.mxu0 0.0
    %112 = vmatpush1.msra.mxu0 0.0
    %113 = vmatprep.subr.mxu0 0.0
    %114 = vmatpush1.msra.mxu0 0.0
    %115 = vmatprep.subr.mxu0 0.0
    %116 = vmatpush1.msra.mxu0 0.0
    %117 = vmatprep.subr.mxu0 0.0
    %118 = vmatpush1.msra.mxu0 0.0
    %119 = vmatprep.subr.mxu0 0.0
    %120 = vmatpush1.msra.mxu0 0.0
    %121 = vmatprep.subr.mxu0 0.0
    %122 = vmatpush1.msra.mxu0 0.0
    %123 = vmatprep.subr.mxu0 0.0
    %124 = vmatpush1.msra.mxu0 0.0
    %125 = vmatprep.subr.mxu0 0.0
    %126 = vmatpush1.msra.mxu0 0.0
    %127 = vmatprep.subr.mxu0 0.0
    %128 = vmatpush1.msra.mxu0 0.0
    %129 = vmatprep.subr.mxu0 0.0
    %130 = vmatpush1.msra.mxu0 0.0
    %131 = vmatprep.mubr.f32.mxu0 0.0
    %132 = vmatmul.mubr.f32.gmra.mrb[0].mxu0 %v65
    %v133 = vpop.f32.mrb[0].mxu0
    %v134 = vadd.f32 %v62, %v133
    %v135 = vpop.f32.mrb[0].mxu0
    %136 = vdwg.mxu0
    %v137 = vld [vmem:[#allocation2 + $0x10] sm:$0x3]
    %v138 = vld [vmem:[#allocation2 + $0x18] sm:$0x3]
    %v139 = vld [vmem:[#allocation2 + $0x20] sm:$0x3]
    %vm140 = vcmask 261120
    %v141 = vsel %vm140, %v134, 0.0
    %142 = vadd.xlane.f32.xlu0 %v141
    %v143 = vpop.xlane.xlu0 %142
    %v144 = vmul.f32 %v143, 0.03125
    %v145 = vmul.f32 %v134, %v134
    %v146 = vsel %vm140, %v145, 0.0
    %147 = vadd.xlane.f32.xlu0 %v146
    %v148 = vpop.xlane.xlu0 %147
    %v149 = vmul.f32 %v148, 0.03125
    %v150 = vsub.f32 %v134, %v144
    %v151 = vmul.f32 %v144, %v144
    %v152 = vsub.f32 %v149, %v151
    %v153 = vadd.f32 %v152, 1e-05
    %v154 = vrsqrt.pop %v153
    %v155 = vmul.f32 %v150, %v154
    %v156 = vpack.c.bf16 %v155, %v155
    %v157 = vld [vmem:[#allocation5] sm:$0xf]
    %v158 = vld [vmem:[#allocation5 + $0x4] sm:$0xf]
    %v159 = vld [vmem:[#allocation5 + $0x8] sm:$0xf]
    %v160 = vld [vmem:[#allocation5 + $0xc] sm:$0xf]
    %v161 = vlaneseq
    %v162 = vshrl.u32 %v161, 7
    %v163 = vsub.s32 0, %v162
    %v164 = vrot.slane %v137, %v163
    %v169 = vunpack.c.l.b16 %v157
    %v170 = vunpack.c.l.b16 %v158
    %v171 = vunpack.c.l.b16 %v159
    %v172 = vunpack.c.l.b16 %v160
    %v173 = vpack.c.b16 %v170, %v169
    %v174 = vpack.c.b16 %v172, %v171
    %v178 = vsel %vm140, %v156, 0
    %180 = vmatprep.subr.bf16.mxu0 0
    %181 = vmatpush1.bf16.msra.mxu0 %v173
    %182 = vmatprep.subr.bf16.mxu0 0
    %183 = vmatpush1.bf16.msra.mxu0 %v174
    %184 = vmatprep.subr.bf16.mxu0 0
    %185 = vmatpush1.bf16.msra.mxu0 0
    %186 = vmatprep.subr.bf16.mxu0 0
    %187 = vmatpush1.bf16.msra.mxu0 0
    %188 = vmatprep.subr.bf16.mxu0 0
    %189 = vmatpush1.bf16.msra.mxu0 0
    %190 = vmatprep.subr.bf16.mxu0 0
    %191 = vmatpush1.bf16.msra.mxu0 0
    %192 = vmatprep.subr.bf16.mxu0 0
    %193 = vmatpush1.bf16.msra.mxu0 0
    %194 = vmatprep.subr.bf16.mxu0 0
    %195 = vmatpush1.bf16.msra.mxu0 0
    %196 = vmatprep.subr.bf16.mxu0 0
    %197 = vmatpush1.bf16.msra.mxu0 0
    %198 = vmatprep.subr.bf16.mxu0 0
    %199 = vmatpush1.bf16.msra.mxu0 0
    %200 = vmatprep.subr.bf16.mxu0 0
    %201 = vmatpush1.bf16.msra.mxu0 0
    %202 = vmatprep.subr.bf16.mxu0 0
    %203 = vmatpush1.bf16.msra.mxu0 0
    %204 = vmatprep.subr.bf16.mxu0 0
    %205 = vmatpush1.bf16.msra.mxu0 0
    %206 = vmatprep.subr.bf16.mxu0 0
    %207 = vmatpush1.bf16.msra.mxu0 0
    %208 = vmatprep.subr.bf16.mxu0 0
    %209 = vmatpush1.bf16.msra.mxu0 0
    %210 = vmatprep.subr.bf16.mxu0 0
    %211 = vmatpush1.bf16.msra.mxu0 0
    %212 = vmatprep.mubr.bf16.mxu0 0
    %213 = vmatmul.mubr.bf16.gmra.mrb[0].mxu0 %v178
    %v214 = vpop.f32.mrb[0].mxu0
    %v215 = vadd.f32 %v164, %v214
    %v216 = vpop.f32.mrb[0].mxu0
    %v217 = vpop.f32.mrb[0].mxu0
    %v218 = vpop.f32.mrb[0].mxu0
    %219 = vdwg.mxu0
    %v220 = vpack.c.bf16 %v215, %v215
    %222 = vrot.lane.b32.xlu0 %v220, 96
    %v223 = vpop.permute.xlu0 %222
    %v225 = vsel %vm140, %v220, 0
    %v228 = vsel %vm140, %v223, 0
    %230 = vmatprep.subr.bf16.mxu0 0
    %231 = vmatpush1.bf16.xpose.msra.mxu0 %v228
    %232 = vmatprep.subr.bf16.mxu0 0
    %233 = vmatpush1.bf16.xpose.msra.mxu0 0
    %234 = vmatprep.subr.bf16.mxu0 0
    %235 = vmatpush1.bf16.xpose.msra.mxu0 0
    %236 = vmatprep.subr.bf16.mxu0 0
    %237 = vmatpush1.bf16.xpose.msra.mxu0 0
    %238 = vmatprep.subr.bf16.mxu0 0
    %239 = vmatpush1.bf16.xpose.msra.mxu0 0
    %240 = vmatprep.subr.bf16.mxu0 0
    %241 = vmatpush1.bf16.xpose.msra.mxu0 0
    %242 = vmatprep.subr.bf16.mxu0 0
    %243 = vmatpush1.bf16.xpose.msra.mxu0 0
    %244 = vmatprep.subr.bf16.mxu0 0
    %245 = vmatpush1.bf16.xpose.msra.mxu0 0
    %246 = vmatprep.subr.bf16.mxu0 0
    %247 = vmatpush1.bf16.xpose.msra.mxu0 0
    %248 = vmatprep.subr.bf16.mxu0 0
    %249 = vmatpush1.bf16.xpose.msra.mxu0 0
    %250 = vmatprep.subr.bf16.mxu0 0
    %251 = vmatpush1.bf16.xpose.msra.mxu0 0
    %252 = vmatprep.subr.bf16.mxu0 0
    %253 = vmatpush1.bf16.xpose.msra.mxu0 0
    %254 = vmatprep.subr.bf16.mxu0 0
    %255 = vmatpush1.bf16.xpose.msra.mxu0 0
    %256 = vmatprep.subr.bf16.mxu0 0
    %257 = vmatpush1.bf16.xpose.msra.mxu0 0
    %258 = vmatprep.subr.bf16.mxu0 0
    %259 = vmatpush1.bf16.xpose.msra.mxu0 0
    %260 = vmatprep.subr.bf16.mxu0 0
    %261 = vmatpush1.bf16.xpose.msra.mxu0 0
    %262 = vmatprep.mubr.bf16.mxu0 0
    %263 = vmatmul.mubr.bf16.gmra.mrb[0].mxu0 %v225
    %v264 = vpop.f32.mrb[0].mxu0
    %v265 = vadd.f32 0.0, %v264
    %v266 = vpop.f32.mrb[0].mxu0
    %v267 = vpop.f32.mrb[0].mxu0
    %v268 = vpop.f32.mrb[0].mxu0
    %269 = vdwg.mxu0
    %v270 = vmul.f32 %v265, 0.17677669
    %v271 = vadd.f32 %v270, %v53
    %v272 = vmul.f32 %v271, 1.442695
    %v273 = vpow.pop %v272
    %v274 = vsel %vm63, %v273, 0.0
    %275 = vadd.xlane.f32.xlu0 %v274
    %v276 = vpop.xlane.xlu0 %275
    %v277 = vrcp.pop %v276
    %v278 = vmul.f32 %v273, %v277
    %v279 = vpack.c.bf16 %v278, %v278
    %280 = vrot.lane.b32.xlu0 %v220, 64
    %v281 = vpop.permute.xlu0 %280
    %v283 = vsel %vm63, %v279, 0
    %vm285 = vcmask 1043456
    %v287 = vsel %vm285, %v281, 0
    %289 = vmatprep.subr.bf16.mxu0 0
    %290 = vmatpush1.bf16.msra.mxu0 %v287
    %291 = vmatprep.subr.bf16.mxu0 0
    %292 = vmatpush1.bf16.msra.mxu0 0
    %293 = vmatprep.subr.bf16.mxu0 0
    %294 = vmatpush1.bf16.msra.mxu0 0
    %295 = vmatprep.subr.bf16.mxu0 0
    %296 = vmatpush1.bf16.msra.mxu0 0
    %297 = vmatprep.subr.bf16.mxu0 0
    %298 = vmatpush1.bf16.msra.mxu0 0
    %299 = vmatprep.subr.bf16.mxu0 0
    %300 = vmatpush1.bf16.msra.mxu0 0
    %301 = vmatprep.subr.bf16.mxu0 0
    %302 = vmatpush1.bf16.msra.mxu0 0
    %303 = vmatprep.subr.bf16.mxu0 0
    %304 = vmatpush1.bf16.msra.mxu0 0
    %305 = vmatprep.subr.bf16.mxu0 0
    %306 = vmatpush1.bf16.msra.mxu0 0
    %307 = vmatprep.subr.bf16.mxu0 0
    %308 = vmatpush1.bf16.msra.mxu0 0
    %309 = vmatprep.subr.bf16.mxu0 0
    %310 = vmatpush1.bf16.msra.mxu0 0
    %311 = vmatprep.subr.bf16.mxu0 0
    %312 = vmatpush1.bf16.msra.mxu0 0
    %313 = vmatprep.subr.bf16.mxu0 0
    %314 = vmatpush1.bf16.msra.mxu0 0
    %315 = vmatprep.subr.bf16.mxu0 0
    %316 = vmatpush1.bf16.msra.mxu0 0
    %317 = vmatprep.subr.bf16.mxu0 0
    %318 = vmatpush1.bf16.msra.mxu0 0
    %319 = vmatprep.subr.bf16.mxu0 0
    %320 = vmatpush1.bf16.msra.mxu0 0
    %321 = vmatprep.mubr.bf16.mxu0 0
    %322 = vmatmul.mubr.bf16.gmra.mrb[0].mxu0 %v283
    %v323 = vpop.f32.mrb[0].mxu0
    %v324 = vadd.f32 0.0, %v323
    %v325 = vpop.f32.mrb[0].mxu0
    %v326 = vpop.f32.mrb[0].mxu0
    %v327 = vpop.f32.mrb[0].mxu0
    %328 = vdwg.mxu0
    %v329 = vadd.f32 %v134, %v324
    %v330 = vsel %vm140, %v329, 0.0
    %331 = vadd.xlane.f32.xlu0 %v330
    %v332 = vpop.xlane.xlu0 %331
    %v333 = vmul.f32 %v332, 0.03125
    %v334 = vmul.f32 %v329, %v329
    %v335 = vsel %vm140, %v334, 0.0
    %336 = vadd.xlane.f32.xlu0 %v335
    %v337 = vpop.xlane.xlu0 %336
    %v338 = vmul.f32 %v337, 0.03125
    %v339 = vsub.f32 %v329, %v333
    %v340 = vmul.f32 %v333, %v333
    %v341 = vsub.f32 %v338, %v340
    %v342 = vadd.f32 %v341, 1e-05
    %v343 = vrsqrt.pop %v342
    %v344 = vmul.f32 %v339, %v343
    %v345 = vpack.c.bf16 %v344, %v344
    %v346 = vld [vmem:[#allocation5 + $0x20] sm:$0xf]
    %v347 = vld [vmem:[#allocation5 + $0x24] sm:$0xf]
    %v348 = vld [vmem:[#allocation5 + $0x28] sm:$0xf]
    %v349 = vld [vmem:[#allocation5 + $0x2c] sm:$0xf]
    %v350 = vlaneseq
    %v351 = vshrl.u32 %v350, 7
    %v352 = vsub.s32 0, %v351
    %v353 = vrot.slane %v138, %v352
    %v358 = vunpack.c.l.b16 %v346
    %v359 = vunpack.c.l.b16 %v347
    %v360 = vunpack.c.l.b16 %v348
    %v361 = vunpack.c.l.b16 %v349
    %v362 = vpack.c.b16 %v359, %v358
    %v363 = vpack.c.b16 %v361, %v360
    %v367 = vsel %vm140, %v345, 0
    %369 = vmatprep.subr.bf16.mxu0 0
    %370 = vmatpush1.bf16.msra.mxu0 %v362
    %371 = vmatprep.subr.bf16.mxu0 0
    %372 = vmatpush1.bf16.msra.mxu0 %v363
    %373 = vmatprep.subr.bf16.mxu0 0
    %374 = vmatpush1.bf16.msra.mxu0 0
    %375 = vmatprep.subr.bf16.mxu0 0
    %376 = vmatpush1.bf16.msra.mxu0 0
    %377 = vmatprep.subr.bf16.mxu0 0
    %378 = vmatpush1.bf16.msra.mxu0 0
    %379 = vmatprep.subr.bf16.mxu0 0
    %380 = vmatpush1.bf16.msra.mxu0 0
    %381 = vmatprep.subr.bf16.mxu0 0
    %382 = vmatpush1.bf16.msra.mxu0 0
    %383 = vmatprep.subr.bf16.mxu0 0
    %384 = vmatpush1.bf16.msra.mxu0 0
    %385 = vmatprep.subr.bf16.mxu0 0
    %386 = vmatpush1.bf16.msra.mxu0 0
    %387 = vmatprep.subr.bf16.mxu0 0
    %388 = vmatpush1.bf16.msra.mxu0 0
    %389 = vmatprep.subr.bf16.mxu0 0
    %390 = vmatpush1.bf16.msra.mxu0 0
    %391 = vmatprep.subr.bf16.mxu0 0
    %392 = vmatpush1.bf16.msra.mxu0 0
    %393 = vmatprep.subr.bf16.mxu0 0
    %394 = vmatpush1.bf16.msra.mxu0 0
    %395 = vmatprep.subr.bf16.mxu0 0
    %396 = vmatpush1.bf16.msra.mxu0 0
    %397 = vmatprep.subr.bf16.mxu0 0
    %398 = vmatpush1.bf16.msra.mxu0 0
    %399 = vmatprep.subr.bf16.mxu0 0
    %400 = vmatpush1.bf16.msra.mxu0 0
    %401 = vmatprep.mubr.bf16.mxu0 0
    %402 = vmatmul.mubr.bf16.gmra.mrb[0].mxu0 %v367
    %v403 = vpop.f32.mrb[0].mxu0
    %v404 = vadd.f32 %v353, %v403
    %v405 = vpop.f32.mrb[0].mxu0
    %v406 = vpop.f32.mrb[0].mxu0
    %v407 = vpop.f32.mrb[0].mxu0
    %408 = vdwg.mxu0
    %v409 = vmax.f32 %v404, 0.0
    %v410 = vpack.c.bf16 %v409, %v409
    %v411 = vld [vmem:[#allocation5 + $0x40] sm:$0xf]
    %v412 = vld [vmem:[#allocation5 + $0x44] sm:$0xf]
    %v413 = vld [vmem:[#allocation5 + $0x48] sm:$0xf]
    %v414 = vld [vmem:[#allocation5 + $0x4c] sm:$0xf]
    %v419 = vunpack.c.l.b16 %v411
    %v420 = vunpack.c.l.b16 %v412
    %v421 = vunpack.c.l.b16 %v413
    %v422 = vunpack.c.l.b16 %v414
    %v423 = vpack.c.b16 %v420, %v419
    %v424 = vpack.c.b16 %v422, %v421
    %427 = vmatprep.subr.bf16.mxu0 0
    %428 = vmatpush1.bf16.xpose.msra.mxu0 %v423
    %429 = vmatprep.subr.bf16.mxu0 0
    %430 = vmatpush1.bf16.xpose.msra.mxu0 %v424
    %431 = vmatprep.subr.bf16.mxu0 0
    %432 = vmatpush1.bf16.xpose.msra.mxu0 0
    %433 = vmatprep.subr.bf16.mxu0 0
    %434 = vmatpush1.bf16.xpose.msra.mxu0 0
    %435 = vmatprep.subr.bf16.mxu0 0
    %436 = vmatpush1.bf16.xpose.msra.mxu0 0
    %437 = vmatprep.subr.bf16.mxu0 0
    %438 = vmatpush1.bf16.xpose.msra.mxu0 0
    %439 = vmatprep.subr.bf16.mxu0 0
    %440 = vmatpush1.bf16.xpose.msra.mxu0 0
    %441 = vmatprep.subr.bf16.mxu0 0
    %442 = vmatpush1.bf16.xpose.msra.mxu0 0
    %443 = vmatprep.subr.bf16.mxu0 0
    %444 = vmatpush1.bf16.xpose.msra.mxu0 0
    %445 = vmatprep.subr.bf16.mxu0 0
    %446 = vmatpush1.bf16.xpose.msra.mxu0 0
    %447 = vmatprep.subr.bf16.mxu0 0
    %448 = vmatpush1.bf16.xpose.msra.mxu0 0
    %449 = vmatprep.subr.bf16.mxu0 0
    %450 = vmatpush1.bf16.xpose.msra.mxu0 0
    %451 = vmatprep.subr.bf16.mxu0 0
    %452 = vmatpush1.bf16.xpose.msra.mxu0 0
    %453 = vmatprep.subr.bf16.mxu0 0
    %454 = vmatpush1.bf16.xpose.msra.mxu0 0
    %455 = vmatprep.subr.bf16.mxu0 0
    %456 = vmatpush1.bf16.xpose.msra.mxu0 0
    %457 = vmatprep.subr.bf16.mxu0 0
    %458 = vmatpush1.bf16.xpose.msra.mxu0 0
    %459 = vmatprep.mubr.bf16.mxu0 0
    %460 = vmatmul.mubr.bf16.gmra.mrb[0].mxu0 %v410
    %v461 = vpop.f32.mrb[0].mxu0
    %v462 = vadd.f32 0.0, %v461
    %v463 = vpop.f32.mrb[0].mxu0
    %v464 = vpop.f32.mrb[0].mxu0
    %v465 = vpop.f32.mrb[0].mxu0
    %466 = vdwg.mxu0
    %v467 = vadd.f32 %v329, %v462
    %v468 = vlaneseq
    %v469 = vshrl.u32 %v468, 7
    %v470 = vsub.s32 0, %v469
    %v471 = vrot.slane %v139, %v470
    %v472 = vadd.f32 %v467, %v471
    %v473 = vsel %vm140, %v472, 0.0
    %474 = vadd.xlane.f32.xlu0 %v473
    %v475 = vpop.xlane.xlu0 %474
    %v476 = vmul.f32 %v475, 0.03125
    %v477 = vmul.f32 %v472, %v472
    %v478 = vsel %vm140, %v477, 0.0
    %479 = vadd.xlane.f32.xlu0 %v478
    %v480 = vpop.xlane.xlu0 %479
    %v481 = vmul.f32 %v480, 0.03125
    %v482 = vsub.f32 %v472, %v476
    %v483 = vmul.f32 %v476, %v476
    %v484 = vsub.f32 %v481, %v483
    %v485 = vadd.f32 %v484, 1e-05
    %v486 = vrsqrt.pop %v485
    %v487 = vmul.f32 %v482, %v486
    %v488 = vpack.c.bf16 %v487, %v487
    %v489 = vld [vmem:[#allocation5 + $0x10] sm:$0xf]
    %v490 = vld [vmem:[#allocation5 + $0x14] sm:$0xf]
    %v491 = vld [vmem:[#allocation5 + $0x18] sm:$0xf]
    %v492 = vld [vmem:[#allocation5 + $0x1c] sm:$0xf]
    %v493 = vlaneseq
    %v494 = vshrl.u32 %v493, 7
    %v495 = vsub.s32 1, %v494
    %v496 = vrot.slane %v137, %v495
    %v501 = vunpack.c.l.b16 %v489
    %v502 = vunpack.c.l.b16 %v490
    %v503 = vunpack.c.l.b16 %v491
    %v504 = vunpack.c.l.b16 %v492
    %v505 = vpack.c.b16 %v502, %v501
    %v506 = vpack.c.b16 %v504, %v503
    %v510 = vsel %vm140, %v488, 0
    %512 = vmatprep.subr.bf16.mxu0 0
    %513 = vmatpush1.bf16.msra.mxu0 %v505
    %514 = vmatprep.subr.bf16.mxu0 0
    %515 = vmatpush1.bf16.msra.mxu0 %v506
    %516 = vmatprep.subr.bf16.mxu0 0
    %517 = vmatpush1.bf16.msra.mxu0 0
    %518 = vmatprep.subr.bf16.mxu0 0
    %519 = vmatpush1.bf16.msra.mxu0 0
    %520 = vmatprep.subr.bf16.mxu0 0
    %521 = vmatpush1.bf16.msra.mxu0 0
    %522 = vmatprep.subr.bf16.mxu0 0
    %523 = vmatpush1.bf16.msra.mxu0 0
    %524 = vmatprep.subr.bf16.mxu0 0
    %525 = vmatpush1.bf16.msra.mxu0 0
    %526 = vmatprep.subr.bf16.mxu0 0
    %527 = vmatpush1.bf16.msra.mxu0 0
    %528 = vmatprep.subr.bf16.mxu0 0
    %529 = vmatpush1.bf16.msra.mxu0 0
    %530 = vmatprep.subr.bf16.mxu0 0
    %531 = vmatpush1.bf16.msra.mxu0 0
    %532 = vmatprep.subr.bf16.mxu0 0
    %533 = vmatpush1.bf16.msra.mxu0 0
    %534 = vmatprep.subr.bf16.mxu0 0
    %535 = vmatpush1.bf16.msra.mxu0 0
    %536 = vmatprep.subr.bf16.mxu0 0
    %537 = vmatpush1.bf16.msra.mxu0 0
    %538 = vmatprep.subr.bf16.mxu0 0
    %539 = vmatpush1.bf16.msra.mxu0 0
    %540 = vmatprep.subr.bf16.mxu0 0
    %541 = vmatpush1.bf16.msra.mxu0 0
    %542 = vmatprep.subr.bf16.mxu0 0
    %543 = vmatpush1.bf16.msra.mxu0 0
    %544 = vmatprep.mubr.bf16.mxu0 0
    %545 = vmatmul.mubr.bf16.gmra.mrb[0].mxu0 %v510
    %v546 = vpop.f32.mrb[0].mxu0
    %v547 = vadd.f32 %v496, %v546
    %v548 = vpop.f32.mrb[0].mxu0
    %v549 = vpop.f32.mrb[0].mxu0
    %v550 = vpop.f32.mrb[0].mxu0
    %551 = vdwg.mxu0
    %v552 = vpack.c.bf16 %v547, %v547
    %554 = vrot.lane.b32.xlu0 %v552, 96
    %v555 = vpop.permute.xlu0 %554
    %v557 = vsel %vm140, %v552, 0
    %v560 = vsel %vm140, %v555, 0
    %562 = vmatprep.subr.bf16.mxu0 0
    %563 = vmatpush1.bf16.xpose.msra.mxu0 %v560
    %564 = vmatprep.subr.bf16.mxu0 0
    %565 = vmatpush1.bf16.xpose.msra.mxu0 0
    %566 = vmatprep.subr.bf16.mxu0 0
    %567 = vmatpush1.bf16.xpose.msra.mxu0 0
    %568 = vmatprep.subr.bf16.mxu0 0
    %569 = vmatpush1.bf16.xpose.msra.mxu0 0
    %570 = vmatprep.subr.bf16.mxu0 0
    %571 = vmatpush1.bf16.xpose.msra.mxu0 0
    %572 = vmatprep.subr.bf16.mxu0 0
    %573 = vmatpush1.bf16.xpose.msra.mxu0 0
    %574 = vmatprep.subr.bf16.mxu0 0
    %575 = vmatpush1.bf16.xpose.msra.mxu0 0
    %576 = vmatprep.subr.bf16.mxu0 0
    %577 = vmatpush1.bf16.xpose.msra.mxu0 0
    %578 = vmatprep.subr.bf16.mxu0 0
    %579 = vmatpush1.bf16.xpose.msra.mxu0 0
    %580 = vmatprep.subr.bf16.mxu0 0
    %581 = vmatpush1.bf16.xpose.msra.mxu0 0
    %582 = vmatprep.subr.bf16.mxu0 0
    %583 = vmatpush1.bf16.xpose.msra.mxu0 0
    %584 = vmatprep.subr.bf16.mxu0 0
    %585 = vmatpush1.bf16.xpose.msra.mxu0 0
    %586 = vmatprep.subr.bf16.mxu0 0
    %587 = vmatpush1.bf16.xpose.msra.mxu0 0
    %588 = vmatprep.subr.bf16.mxu0 0
    %589 = vmatpush1.bf16.xpose.msra.mxu0 0
    %590 = vmatprep.subr.bf16.mxu0 0
    %591 = vmatpush1.bf16.xpose.msra.mxu0 0
    %592 = vmatprep.subr.bf16.mxu0 0
    %593 = vmatpush1.bf16.xpose.msra.mxu0 0
    %594 = vmatprep.mubr.bf16.mxu0 0
    %595 = vmatmul.mubr.bf16.gmra.mrb[0].mxu0 %v557
    %v596 = vpop.f32.mrb[0].mxu0
    %v597 = vadd.f32 0.0, %v596
    %v598 = vpop.f32.mrb[0].mxu0
    %v599 = vpop.f32.mrb[0].mxu0
    %v600 = vpop.f32.mrb[0].mxu0
    %601 = vdwg.mxu0
    %v602 = vmul.f32 %v597, 0.17677669
    %v603 = vadd.f32 %v602, %v53
    %v604 = vmul.f32 %v603, 1.442695
    %v605 = vpow.pop %v604
    %v606 = vsel %vm63, %v605, 0.0
    %607 = vadd.xlane.f32.xlu0 %v606
    %v608 = vpop.xlane.xlu0 %607
    %v609 = vrcp.pop %v608
    %v610 = vmul.f32 %v605, %v609
    %v611 = vpack.c.bf16 %v610, %v610
    %612 = vrot.lane.b32.xlu0 %v552, 64
    %v613 = vpop.permute.xlu0 %612
    %v615 = vsel %vm63, %v611, 0
    %v618 = vsel %vm285, %v613, 0
    %620 = vmatprep.subr.bf16.mxu0 0
    %621 = vmatpush1.bf16.msra.mxu0 %v618
    %622 = vmatprep.subr.bf16.mxu0 0
    %623 = vmatpush1.bf16.msra.mxu0 0
    %624 = vmatprep.subr.bf16.mxu0 0
    %625 = vmatpush1.bf16.msra.mxu0 0
    %626 = vmatprep.subr.bf16.mxu0 0
    %627 = vmatpush1.bf16.msra.mxu0 0
    %628 = vmatprep.subr.bf16.mxu0 0
    %629 = vmatpush1.bf16.msra.mxu0 0
    %630 = vmatprep.subr.bf16.mxu0 0
    %631 = vmatpush1.bf16.msra.mxu0 0
    %632 = vmatprep.subr.bf16.mxu0 0
    %633 = vmatpush1.bf16.msra.mxu0 0
    %634 = vmatprep.subr.bf16.mxu0 0
    %635 = vmatpush1.bf16.msra.mxu0 0
    %636 = vmatprep.subr.bf16.mxu0 0
    %637 = vmatpush1.bf16.msra.mxu0 0
    %638 = vmatprep.subr.bf16.mxu0 0
    %639 = vmatpush1.bf16.msra.mxu0 0
    %640 = vmatprep.subr.bf16.mxu0 0
    %641 = vmatpush1.bf16.msra.mxu0 0
    %642 = vmatprep.subr.bf16.mxu0 0
    %643 = vmatpush1.bf16.msra.mxu0 0
    %644 = vmatprep.subr.bf16.mxu0 0
    %645 = vmatpush1.bf16.msra.mxu0 0
    %646 = vmatprep.subr.bf16.mxu0 0
    %647 = vmatpush1.bf16.msra.mxu0 0
    %648 = vmatprep.subr.bf16.mxu0 0
    %649 = vmatpush1.bf16.msra.mxu0 0
    %650 = vmatprep.subr.bf16.mxu0 0
    %651 = vmatpush1.bf16.msra.mxu0 0
    %652 = vmatprep.mubr.bf16.mxu0 0
    %653 = vmatmul.mubr.bf16.gmra.mrb[0].mxu0 %v615
    %v654 = vpop.f32.mrb[0].mxu0
    %v655 = vadd.f32 0.0, %v654
    %v656 = vpop.f32.mrb[0].mxu0
    %v657 = vpop.f32.mrb[0].mxu0
    %v658 = vpop.f32.mrb[0].mxu0
    %659 = vdwg.mxu0
    %v660 = vadd.f32 %v472, %v655
    %v661 = vsel %vm140, %v660, 0.0
    %662 = vadd.xlane.f32.xlu0 %v661
    %v663 = vpop.xlane.xlu0 %662
    %v664 = vmul.f32 %v663, 0.03125
    %v665 = vmul.f32 %v660, %v660
    %v666 = vsel %vm140, %v665, 0.0
    %667 = vadd.xlane.f32.xlu0 %v666
    %v668 = vpop.xlane.xlu0 %667
    %v669 = vmul.f32 %v668, 0.03125
    %v670 = vsub.f32 %v660, %v664
    %v671 = vmul.f32 %v664, %v664
    %v672 = vsub.f32 %v669, %v671
    %v673 = vadd.f32 %v672, 1e-05
    %v674 = vrsqrt.pop %v673
    %v675 = vmul.f32 %v670, %v674
    %v676 = vpack.c.bf16 %v675, %v675
    %v677 = vld [vmem:[#allocation5 + $0x30] sm:$0xf]
    %v678 = vld [vmem:[#allocation5 + $0x34] sm:$0xf]
    %v679 = vld [vmem:[#allocation5 + $0x38] sm:$0xf]
    %v680 = vld [vmem:[#allocation5 + $0x3c] sm:$0xf]
    %v681 = vlaneseq
    %v682 = vshrl.u32 %v681, 7
    %v683 = vsub.s32 1, %v682
    %v684 = vrot.slane %v138, %v683
    %v689 = vunpack.c.l.b16 %v677
    %v690 = vunpack.c.l.b16 %v678
    %v691 = vunpack.c.l.b16 %v679
    %v692 = vunpack.c.l.b16 %v680
    %v693 = vpack.c.b16 %v690, %v689
    %v694 = vpack.c.b16 %v692, %v691
    %v698 = vsel %vm140, %v676, 0
    %700 = vmatprep.subr.bf16.mxu0 0
    %701 = vmatpush1.bf16.msra.mxu0 %v693
    %702 = vmatprep.subr.bf16.mxu0 0
    %703 = vmatpush1.bf16.msra.mxu0 %v694
    %704 = vmatprep.subr.bf16.mxu0 0
    %705 = vmatpush1.bf16.msra.mxu0 0
    %706 = vmatprep.subr.bf16.mxu0 0
    %707 = vmatpush1.bf16.msra.mxu0 0
    %708 = vmatprep.subr.bf16.mxu0 0
    %709 = vmatpush1.bf16.msra.mxu0 0
    %710 = vmatprep.subr.bf16.mxu0 0
    %711 = vmatpush1.bf16.msra.mxu0 0
    %712 = vmatprep.subr.bf16.mxu0 0
    %713 = vmatpush1.bf16.msra.mxu0 0
    %714 = vmatprep.subr.bf16.mxu0 0
    %715 = vmatpush1.bf16.msra.mxu0 0
    %716 = vmatprep.subr.bf16.mxu0 0
    %717 = vmatpush1.bf16.msra.mxu0 0
    %718 = vmatprep.subr.bf16.mxu0 0
    %719 = vmatpush1.bf16.msra.mxu0 0
    %720 = vmatprep.subr.bf16.mxu0 0
    %721 = vmatpush1.bf16.msra.mxu0 0
    %722 = vmatprep.subr.bf16.mxu0 0
    %723 = vmatpush1.bf16.msra.mxu0 0
    %724 = vmatprep.subr.bf16.mxu0 0
    %725 = vmatpush1.bf16.msra.mxu0 0
    %726 = vmatprep.subr.bf16.mxu0 0
    %727 = vmatpush1.bf16.msra.mxu0 0
    %728 = vmatprep.subr.bf16.mxu0 0
    %729 = vmatpush1.bf16.msra.mxu0 0
    %730 = vmatprep.subr.bf16.mxu0 0
    %731 = vmatpush1.bf16.msra.mxu0 0
    %732 = vmatprep.mubr.bf16.mxu0 0
    %733 = vmatmul.mubr.bf16.gmra.mrb[0].mxu0 %v698
    %v734 = vpop.f32.mrb[0].mxu0
    %v735 = vadd.f32 %v684, %v734
    %v736 = vpop.f32.mrb[0].mxu0
    %v737 = vpop.f32.mrb[0].mxu0
    %v738 = vpop.f32.mrb[0].mxu0
    %739 = vdwg.mxu0
    %v740 = vmax.f32 %v735, 0.0
    %v741 = vpack.c.bf16 %v740, %v740
    %v742 = vld [vmem:[#allocation5 + $0x50] sm:$0xf]
    %v743 = vld [vmem:[#allocation5 + $0x54] sm:$0xf]
    %v744 = vld [vmem:[#allocation5 + $0x58] sm:$0xf]
    %v745 = vld [vmem:[#allocation5 + $0x5c] sm:$0xf]
    %v750 = vunpack.c.l.b16 %v742
    %v751 = vunpack.c.l.b16 %v743
    %v752 = vunpack.c.l.b16 %v744
    %v753 = vunpack.c.l.b16 %v745
    %v754 = vpack.c.b16 %v751, %v750
    %v755 = vpack.c.b16 %v753, %v752
    %758 = vmatprep.subr.bf16.mxu0 0
    %759 = vmatpush1.bf16.xpose.msra.mxu0 %v754
    %760 = vmatprep.subr.bf16.mxu0 0
    %761 = vmatpush1.bf16.xpose.msra.mxu0 %v755
    %762 = vmatprep.subr.bf16.mxu0 0
    %763 = vmatpush1.bf16.xpose.msra.mxu0 0
    %764 = vmatprep.subr.bf16.mxu0 0
    %765 = vmatpush1.bf16.xpose.msra.mxu0 0
    %766 = vmatprep.subr.bf16.mxu0 0
    %767 = vmatpush1.bf16.xpose.msra.mxu0 0
    %768 = vmatprep.subr.bf16.mxu0 0
    %769 = vmatpush1.bf16.xpose.msra.mxu0 0
    %770 = vmatprep.subr.bf16.mxu0 0
    %771 = vmatpush1.bf16.xpose.msra.mxu0 0
    %772 = vmatprep.subr.bf16.mxu0 0
    %773 = vmatpush1.bf16.xpose.msra.mxu0 0
    %774 = vmatprep.subr.bf16.mxu0 0
    %775 = vmatpush1.bf16.xpose.msra.mxu0 0
    %776 = vmatprep.subr.bf16.mxu0 0
    %777 = vmatpush1.bf16.xpose.msra.mxu0 0
    %778 = vmatprep.subr.bf16.mxu0 0
    %779 = vmatpush1.bf16.xpose.msra.mxu0 0
    %780 = vmatprep.subr.bf16.mxu0 0
    %781 = vmatpush1.bf16.xpose.msra.mxu0 0
    %782 = vmatprep.subr.bf16.mxu0 0
    %783 = vmatpush1.bf16.xpose.msra.mxu0 0
    %784 = vmatprep.subr.bf16.mxu0 0
    %785 = vmatpush1.bf16.xpose.msra.mxu0 0
    %786 = vmatprep.subr.bf16.mxu0 0
    %787 = vmatpush1.bf16.xpose.msra.mxu0 0
    %788 = vmatprep.subr.bf16.mxu0 0
    %789 = vmatpush1.bf16.xpose.msra.mxu0 0
    %790 = vmatprep.mubr.bf16.mxu0 0
    %791 = vmatmul.mubr.bf16.gmra.mrb[0].mxu0 %v741
    %v792 = vpop.f32.mrb[0].mxu0
    %v793 = vadd.f32 0.0, %v792
    %v794 = vpop.f32.mrb[0].mxu0
    %v795 = vpop.f32.mrb[0].mxu0
    %v796 = vpop.f32.mrb[0].mxu0
    %797 = vdwg.mxu0
    %v798 = vadd.f32 %v660, %v793
    %v799 = vlaneseq
    %v800 = vshrl.u32 %v799, 7
    %v801 = vsub.s32 1, %v800
    %v802 = vrot.slane %v139, %v801
    %v803 = vadd.f32 %v798, %v802
    %v804 = vsel %vm140, %v803, 0.0
    %805 = vadd.xlane.f32.xlu0 %v804
    %v806 = vpop.xlane.xlu0 %805
    %v807 = vmul.f32 %v806, 0.03125
    %v808 = vmul.f32 %v803, %v803
    %v809 = vsel %vm140, %v808, 0.0
    %810 = vadd.xlane.f32.xlu0 %v809
    %v811 = vpop.xlane.xlu0 %810
    %v812 = vmul.f32 %v811, 0.03125
    %v813 = vsub.f32 %v803, %v807
    %v814 = vmul.f32 %v807, %v807
    %v815 = vsub.f32 %v812, %v814
    %v816 = vadd.f32 %v815, 1e-05
    %v817 = vrsqrt.pop %v816
    %v818 = vmul.f32 %v813, %v817
    %v819 = vpack.c.bf16 %v818, %v818
    %v820 = vld [vmem:[#allocation5 + $0x60] sm:$0xf]
    %v821 = vld [vmem:[#allocation5 + $0x64] sm:$0xf]
    %v822 = vld [vmem:[#allocation5 + $0x68] sm:$0xf]
    %v823 = vld [vmem:[#allocation5 + $0x6c] sm:$0xf]
    %v824 = vld [vmem:[#allocation2 + $0x28] sm:$0x1]
    %v825 = vlaneseq
    %v826 = vshrl.u32 %v825, 7
    %v827 = vsub.s32 0, %v826
    %v828 = vrot.slane %v824, %v827
    %v833 = vunpack.c.l.b16 %v820
    %v834 = vunpack.c.l.b16 %v821
    %v835 = vunpack.c.l.b16 %v822
    %v836 = vunpack.c.l.b16 %v823
    %v837 = vpack.c.b16 %v834, %v833
    %v838 = vpack.c.b16 %v836, %v835
    %v842 = vsel %vm140, %v819, 0
    %844 = vmatprep.subr.bf16.mxu0 0
    %845 = vmatpush1.bf16.msra.mxu0 %v837
    %846 = vmatprep.subr.bf16.mxu0 0
    %847 = vmatpush1.bf16.msra.mxu0 %v838
    %848 = vmatprep.subr.bf16.mxu0 0
    %849 = vmatpush1.bf16.msra.mxu0 0
    %850 = vmatprep.subr.bf16.mxu0 0
    %851 = vmatpush1.bf16.msra.mxu0 0
    %852 = vmatprep.subr.bf16.mxu0 0
    %853 = vmatpush1.bf16.msra.mxu0 0
    %854 = vmatprep.subr.bf16.mxu0 0
    %855 = vmatpush1.bf16.msra.mxu0 0
    %856 = vmatprep.subr.bf16.mxu0 0
    %857 = vmatpush1.bf16.msra.mxu0 0
    %858 = vmatprep.subr.bf16.mxu0 0
    %859 = vmatpush1.bf16.msra.mxu0 0
    %860 = vmatprep.subr.bf16.mxu0 0
    %861 = vmatpush1.bf16.msra.mxu0 0
    %862 = vmatprep.subr.bf16.mxu0 0
    %863 = vmatpush1.bf16.msra.mxu0 0
    %864 = vmatprep.subr.bf16.mxu0 0
    %865 = vmatpush1.bf16.msra.mxu0 0
    %866 = vmatprep.subr.bf16.mxu0 0
    %867 = vmatpush1.bf16.msra.mxu0 0
    %868 = vmatprep.subr.bf16.mxu0 0
    %869 = vmatpush1.bf16.msra.mxu0 0
    %870 = vmatprep.subr.bf16.mxu0 0
    %871 = vmatpush1.bf16.msra.mxu0 0
    %872 = vmatprep.subr.bf16.mxu0 0
    %873 = vmatpush1.bf16.msra.mxu0 0
    %874 = vmatprep.subr.bf16.mxu0 0
    %875 = vmatpush1.bf16.msra.mxu0 0
    %876 = vmatprep.mubr.bf16.mxu0 0
    %877 = vmatmul.mubr.bf16.gmra.mrb[0].mxu0 %v842
    %v878 = vpop.f32.mrb[0].mxu0
    %v879 = vadd.f32 %v828, %v878
    %v880 = vpop.f32.mrb[0].mxu0
    %v881 = vpop.f32.mrb[0].mxu0
    %v882 = vpop.f32.mrb[0].mxu0
    %883 = vdwg.mxu0
    %884 = vst [vmem:[#allocation7] sm:$0xff] %v879
    // Predicated region
    $region22: #{tinygpt_forward.1} parent=1 // pred_check
      _
    $region23: #{tinygpt_forward.1} parent=1 // pred_check_branch
      %886 = sbr.rel (0) target = $region25
    $region24: #{tinygpt_forward.1} parent=1 // pred_region
      %s888 = ssub.s32 128, 128
      %889 = vsyncadd [#allocation4], %s888
      %s891 = sshll.u32 [#allocation7], 4
      %s892 = int_to_ptr.vmem [resolvable:$true] %s891
      %894 = dma.vmem_to_hbm [thread:$0]  %s892, 128, %s3, [#allocation4]
    $region25: #{tinygpt_forward.1} parent=1 // pred_fallthru
      _
    // Predicated region
    $region26: #{tinygpt_forward.1} parent=1 // pred_check
      _
    $region27: #{tinygpt_forward.1} parent=1 // pred_check_branch
      %896 = sbr.rel (0) target = $region29
    $region28: #{tinygpt_forward.1} parent=1 // pred_region
      %897 = dma.done [#allocation4], 128
    $region29: #{tinygpt_forward.1} parent=1 // pred_fallthru
      _
    %898 = vsyncpa [#allocation3], 1
    %899 = vsyncpa [#allocation6], 1
    %900 = vsyncpa [#allocation4], 1

</llo_original>
